<compile_context>
chip_gen: v7x
topology: tpu7x:2x2x1
jax: 0.10.0
libtpu: 0.0.40
codegen_flags: <defaults>
</compile_context>

<pallas_src>
import jax
import jax.numpy as jnp
import numpy as np
from jax.experimental import pallas as pl
from jax.experimental.pallas import tpu as pltpu


def _posenc_kernel(a_ref, b_ref, o_ref):
    """o[r, l] = sin((row0 + r) * a[l] + b[l]).

    a/b are (1, lanes) per-column constants with everything foldable folded in
    at trace time: the positions-per-row scale lives in `a`, the cos phase
    shift (cos(x) = sin(x + pi/2)) and intra-row position offset live in `b`.
    Per element: one convert + one mul + one add + one sin.
    """
    tile_r, lanes = o_ref.shape
    a = a_ref[...]                                            # (1, lanes)
    row0 = (pl.program_id(0) * tile_r).astype(jnp.float32)    # scalar
    bias = row0 * a + b_ref[...]                              # (1, lanes), once per tile
    r = jax.lax.broadcasted_iota(jnp.int32, (tile_r, lanes), 0).astype(jnp.float32)
    o_ref[...] = jnp.sin(r * a + bias).astype(o_ref.dtype)


def _column_constants(d_embed):
    """Per-column inverse frequency and phase (cos(x) = sin(x + pi/2)), float64."""
    col = np.arange(d_embed)
    inv_freq = np.power(10000.0, -(2.0 * (col // 2)) / d_embed)
    phase = np.where(col % 2 == 1, np.pi / 2.0, 0.0)
    return inv_freq, phase


def _sublane_multiple(dtype):
    # 8 for 4-byte, 16 for 2-byte, 32 for 1-byte dtypes (packed vreg sublanes).
    return max(8, 32 // jnp.dtype(dtype).itemsize)


def build_sinusoid_table(n_pos, d_embed, dtype=jnp.float32):
    """Build the (n_pos, d_embed) sinusoid table with a Pallas kernel."""
    inv_freq, phase = _column_constants(d_embed)
    LANES = 128

    flat_pack = (d_embed < LANES) and (LANES % d_embed == 0)
    if flat_pack:
        # Pack the row-major (n_pos, d_embed) table into a fully lane-dense
        # (rows, 128) slab: flat index f = pos*d_embed + col -> (f//128, f%128),
        # so pos = row*ppr + lane//d_embed and col = lane % d_embed.
        ppr = LANES // d_embed                       # positions per 128-lane row
        lane = np.arange(LANES)
        c = lane % d_embed
        a = ppr * inv_freq[c]                        # fold ppr into `a` (trace time)
        b = (lane // d_embed) * inv_freq[c] + phase[c]
        n_rows = pl.cdiv(n_pos * d_embed, LANES)
        out_cols = LANES
    else:
        # Standard layout; pad the column axis to a multiple of 128 so every
        # store is a full unmasked vst.  Padding columns (a=b=0 -> sin(0)=0)
        # are sliced off in the wrapper.
        ppr = 1
        out_cols = pl.cdiv(d_embed, LANES) * LANES
        a = np.zeros(out_cols, dtype=np.float64)
        b = np.zeros(out_cols, dtype=np.float64)
        a[:d_embed] = inv_freq
        b[:d_embed] = phase
        n_rows = n_pos

    a = jnp.asarray(a, jnp.float32).reshape(1, out_cols)
    b = jnp.asarray(b, jnp.float32).reshape(1, out_cols)

    # Tile sizing: dtype-aware sublane multiple, ~4 MiB output tile budget
    # (double-buffered -> ~8 MiB VMEM, fits every generation's scoped limit),
    # and prefer an even grid length >= 2 so (a) HBM writeback of tile i-1
    # overlaps the sin compute of tile i and (b) v7x's two TensorCores split
    # the single "parallel" grid axis evenly.
    itemsize = jnp.dtype(dtype).itemsize
    sub = _sublane_multiple(dtype)
    budget_rows = (4 << 20) // (out_cols * itemsize)
    max_tile_rows = max(sub, budget_rows // sub * sub)

    steps = pl.cdiv(n_rows, max_tile_rows)
    if n_rows > sub:                     # big enough to split into >=2 aligned tiles
        steps = max(steps, 2)
        if steps % 2:                    # even step count -> clean 2-core split
            steps += 1
    tile_r = min(max_tile_rows, pl.cdiv(pl.cdiv(n_rows, steps), sub) * sub)
    grid = (pl.cdiv(n_rows, tile_r),)

    out = pl.pallas_call(
        _posenc_kernel,
        out_shape=jax.ShapeDtypeStruct((n_rows, out_cols), dtype),
        grid=grid,
        in_specs=[
            pl.BlockSpec((1, out_cols), lambda i: (0, 0)),   # constant: fetched once
            pl.BlockSpec((1, out_cols), lambda i: (0, 0)),
        ],
        out_specs=pl.BlockSpec((tile_r, out_cols), lambda i: (i, 0)),
        compiler_params=pltpu.CompilerParams(
            dimension_semantics=("parallel",),
            vmem_limit_bytes=32 << 20,
        ),
    )(a, b)

    if flat_pack:
        out = out.reshape(n_rows * out_cols)[: n_pos * d_embed].reshape(n_pos, d_embed)
    elif out_cols != d_embed:
        out = out[:, :d_embed]
    return out


class PositionalEncoding:
    """Analogue of the PyTorch module: table built once in __init__, forward slices."""

    def __init__(self, d_embed, max_len=5000, dtype=jnp.float32):
        self.d_embed = d_embed
        self.max_len = max_len
        self.encoding = build_sinusoid_table(max_len, d_embed, dtype=dtype)

    def __call__(self, x):
        _, seq_len = x.shape
        assert seq_len <= self.max_len, "seq_len exceeds max_len"
        return self.encoding[:seq_len, :]


def _reference(seq_len, d_embed):
    """Pure-numpy reproduction of the PyTorch table (float32, like torch)."""
    pos = np.arange(seq_len, dtype=np.float32)[:, None]
    _2i = np.arange(0, d_embed, 2, dtype=np.float32)
    enc = np.zeros((seq_len, d_embed), dtype=np.float32)
    enc[:, 0::2] = np.sin(pos / (10000.0 ** (_2i / d_embed)))
    enc[:, 1::2] = np.cos(pos / (10000.0 ** (_2i / d_embed)))
    return enc


if __name__ == "__main__":
    batch, seq_len, d_embed, max_len = 2, 8, 32, 64

    key = jax.random.PRNGKey(0)
    # token-id-like input; only the shape is consumed by forward()
    x = jax.random.randint(key, (batch, seq_len), 0, 100, dtype=jnp.int32)

    pe = PositionalEncoding(d_embed=d_embed, max_len=max_len)
    out = pe(x)
    out = jax.block_until_ready(out)
    assert out.shape == (seq_len, d_embed)

    ref = _reference(seq_len, d_embed)
    np.testing.assert_allclose(np.asarray(out), ref, atol=1e-5, rtol=1e-5)

    # TODO(synk): for very large max_len (thousands of radians) f32 sin range
    # reduction may exceed 1e-5 vs the numpy reference on the last rows; the
    # table-build is a one-time init cost, so switch to f64 constants + split
    # range reduction if that ever matters.
    print("KERNEL_OK")
</pallas_src>

<mosaic_0001>
module attributes {stable_mosaic.version = 11 : i64} {
  func.func @_posenc_kernel(%arg0: i32, %arg1: memref<1x128xf32, #tpu.memory_space<vmem>>, %arg2: memref<1x128xf32, #tpu.memory_space<vmem>>, %arg3: memref<8x128xf32, #tpu.memory_space<vmem>>) attributes {dimension_semantics = [#tpu.dimension_semantics<parallel>], iteration_bounds = array<i64: 2>, scalar_prefetch = 0 : i64, scratch_operands = 0 : i64, tpu.core_type = #tpu.core_type<tc>, window_params = [{pipeline_mode = #tpu.pipeline_mode<synchronous>, transform_indices = @transform_0, window_bounds = array<i64: 1, 128>}, {pipeline_mode = #tpu.pipeline_mode<synchronous>, transform_indices = @transform_1, window_bounds = array<i64: 1, 128>}, {transform_indices = @transform_2, window_bounds = array<i64: 8, 128>}]} {
    %c0 = arith.constant 0 : index
    %c0_0 = arith.constant 0 : index
    %0 = vector.load %arg1[%c0, %c0_0] : memref<1x128xf32, #tpu.memory_space<vmem>>, vector<1x128xf32>
    %c8_i32 = arith.constant 8 : i32
    %1 = arith.muli %arg0, %c8_i32 : i32
    %2 = arith.sitofp %1 : i32 to f32
    %3 = vector.broadcast %2 : f32 to vector<1x128xf32>
    %4 = arith.mulf %3, %0 : vector<1x128xf32>
    %c0_1 = arith.constant 0 : index
    %c0_2 = arith.constant 0 : index
    %5 = vector.load %arg2[%c0_1, %c0_2] : memref<1x128xf32, #tpu.memory_space<vmem>>, vector<1x128xf32>
    %6 = arith.addf %4, %5 : vector<1x128xf32>
    %7 = tpu.iota {dimensions = array<i32: 0>} : vector<8x128xi32>
    %8 = arith.sitofp %7 : vector<8x128xi32> to vector<8x128xf32>
    %9 = vector.broadcast %0 : vector<1x128xf32> to vector<8x128xf32>
    %10 = arith.mulf %8, %9 : vector<8x128xf32>
    %11 = vector.broadcast %6 : vector<1x128xf32> to vector<8x128xf32>
    %12 = arith.addf %10, %11 : vector<8x128xf32>
    %13 = math.sin %12 : vector<8x128xf32>
    %c0_3 = arith.constant 0 : index
    %c0_4 = arith.constant 0 : index
    %14 = vector.load %arg3[%c0_3, %c0_4] : memref<8x128xf32, #tpu.memory_space<vmem>>, vector<8x128xf32>
    tpu.vector_store %arg3[%c0_3, %c0_4], %13 {strides = array<i32>} : memref<8x128xf32, #tpu.memory_space<vmem>>, vector<8x128xf32>,
    return
  }
  func.func @transform_0(%arg0: i32) -> (i32, i32) {
    %c0_i32 = arith.constant 0 : i32
    %c0_i32_0 = arith.constant 0 : i32
    %c0_i32_1 = arith.constant 0 : i32
    return %c0_i32, %c0_i32_0 : i32, i32
  }
  func.func @transform_1(%arg0: i32) -> (i32, i32) {
    %c0_i32 = arith.constant 0 : i32
    %c0_i32_0 = arith.constant 0 : i32
    %c0_i32_1 = arith.constant 0 : i32
    return %c0_i32, %c0_i32_0 : i32, i32
  }
  func.func @transform_2(%arg0: i32) -> (i32, i32) {
    %c0_i32 = arith.constant 0 : i32
    %c0_i32_0 = arith.constant 0 : i32
    return %arg0, %c0_i32 : i32, i32
  }
}

</mosaic_0001>

<llo_original>
// kernel: tpu_custom_call.1
$region0: #{tpu_custom_call.1}
  #allocation0 [shape = 'u32[]', space=smem, size = 0x4, offset = 0x4, fixed_abs, tag = 'smem constant byte address 0x4 - core index']
  #allocation1 [shape = 'u32[144,128]{1,0:T(1,128)}', space=vmem, size = 0x12000, scoped, tag = 'internal scratch']
  %s0 = inlined_call_operand.hbm [shape: f32[1,128], index: 0, kind: input, shape index: {}]
  %s1 = inlined_call_operand.vmem [shape: f32[1,128], index: 1, kind: input, shape index: {}]
  %s2 = inlined_call_operand.hbm [shape: f32[16,128], index: 2, kind: output, shape index: {}]
  %s3 = sld [smem:[#allocation0]]
  $region45: #{tpu_custom_call.1} parent=0
    _
  %s5 = ssub.s32 1, %s3
  %s6 = scalar_select 0, %s5, %s3
  $region1: #{tpu_custom_call.1} parent=0
    #allocation2 [shape = 'u8[512]{0}', space=vmem, size = 0x400, scoped, tag = 'input window, operand 0, single buffered']
    #allocation3 [shape = 's32[2]{0}', space=sflag, size = 0x8, scoped, tag = 'scoped memory for tpu_custom_call.1']
    #allocation4 [shape = 's32[2]{0}', space=sflag, size = 0x8, scoped, tag = 'scoped memory for tpu_custom_call.1']
    #allocation5 [shape = 'u8[8192]{0}', space=vmem, size = 0x2000, scoped, tag = 'output window, operand 0']
    %7 = vsyncpa [#allocation3], 0
    %8 = vsyncpa [#allocation4], 0
    %s9 = scalar_lea.sflag [#allocation4], 1
    %10 = vsyncpa %s9, 0
    loop: start=0, step=1, limit=4
    $region2: #{tpu_custom_call.1} parent=1 // loop_pre_header
      _
    $region3: #{tpu_custom_call.1} parent=1 // loop_header
      %s12 = sphi 0, %s16
      %p13 = scmp.ge.s32.totalorder %s12, 4
      %s20 = sphi 0, %s20
      %s22 = sphi 0, %s20
      %s23 = sphi 0, %s22
      %s37 = sphi 0, %s23
      %s41 = sphi 0, %s41
      %s43 = sphi 0, %s41
      %s44 = sphi 0, %s43
      %s58 = sphi 0, %s44
      %s64 = sphi 0, %s66
      %s67 = sphi 0, %s64
      %s68 = sphi 0, %s67
      %s84 = sphi 0, %s68
    $region4: #{tpu_custom_call.1} parent=1 // loop_header_branch
      %15 = sbr.rel (%p13) target = $region8
    $region5: #{tpu_custom_call.1} parent=1 // loop_body
      %s17 = ssub.s32 %s12, 1
      %s18 = ssub.s32 %s12, 2
      %s19 = sadd.s32 %s12, 1
      %s21 = sadd.s32 %s20, 1
      %p24 = scmp.eq.s32.totalorder %s12, 1
      %p25 = scmp.ne.s32.totalorder %s20, %s22
      %p26 = scmp.eq.s32.totalorder %s12, 0
      %p27 = por %p25, %p26
      %p28 = scmp.ne.s32.totalorder %s20, %s22
      %p29 = scmp.eq.s32.totalorder %s17, 1
      %p30 = por %p28, %p29
      %p31 = scmp.ne.s32.totalorder %s22, %s23
      %p32 = scmp.eq.s32.totalorder %s17, 0
      %p33 = por %p31, %p32
      %p34 = scmp.ne.s32.totalorder %s22, %s23
      %p35 = scmp.eq.s32.totalorder %s18, 1
      %p36 = por %p34, %p35
      %p38 = scmp.ne.s32.totalorder %s23, %s37
      %p39 = scmp.eq.s32.totalorder %s18, 0
      %p40 = por %p38, %p39
      %s42 = sadd.s32 %s41, 1
      %p45 = scmp.eq.s32.totalorder %s12, 1
      %p46 = scmp.ne.s32.totalorder %s41, %s43
      %p47 = scmp.eq.s32.totalorder %s12, 0
      %p48 = por %p46, %p47
      %p49 = scmp.ne.s32.totalorder %s41, %s43
      %p50 = scmp.eq.s32.totalorder %s17, 1
      %p51 = por %p49, %p50
      %p52 = scmp.ne.s32.totalorder %s43, %s44
      %p53 = scmp.eq.s32.totalorder %s17, 0
      %p54 = por %p52, %p53
      %p55 = scmp.ne.s32.totalorder %s43, %s44
      %p56 = scmp.eq.s32.totalorder %s18, 1
      %p57 = por %p55, %p56
      %p59 = scmp.ne.s32.totalorder %s44, %s58
      %p60 = scmp.eq.s32.totalorder %s18, 0
      %p61 = por %p59, %p60
      %s62 = ssub.s32 %s12, %s19
      %p63 = scmp.eq.s32.totalorder %s62, 0
      %s65 = sadd.s32 %s64, 1
      %s66 = scalar_select %p63, %s64, %s65
      %p69 = pneg %p63
      %p70 = scmp.eq.s32.totalorder %s12, 1
      %p71 = por %p69, %p70
      %p72 = scmp.ne.s32.totalorder %s64, %s67
      %p73 = scmp.eq.s32.totalorder %s12, 0
      %p74 = por %p72, %p73
      %p75 = scmp.ne.s32.totalorder %s64, %s67
      %p76 = scmp.eq.s32.totalorder %s17, 1
      %p77 = por %p75, %p76
      %p78 = scmp.ne.s32.totalorder %s67, %s68
      %p79 = scmp.eq.s32.totalorder %s17, 0
      %p80 = por %p78, %p79
      %p81 = scmp.ne.s32.totalorder %s67, %s68
      %p82 = scmp.eq.s32.totalorder %s18, 1
      %p83 = por %p81, %p82
      %p85 = scmp.ne.s32.totalorder %s68, %s84
      %p86 = scmp.eq.s32.totalorder %s18, 0
      %p87 = por %p85, %p86
      %p88 = scmp.le.s32.totalorder 1, %s12
      %p89 = scmp.lt.s32.totalorder %s12, 3
      %p90 = pnand %p88, %p89
      %p91 = pneg %p90
      // Predicated region
      $region9: #{tpu_custom_call.1} parent=5 // pred_check
        _
      $region10: #{tpu_custom_call.1} parent=5 // pred_check_branch
        %93 = sbr.rel (%p90) target = $region12
      $region11: #{tpu_custom_call.1} parent=5 // pred_region
        %s94 = ssub.s32 %s12, 1
        // Predicated region
        $region13: #{tpu_custom_call.1} parent=11 // pred_check
          %p95 = pneg %p33
        $region14: #{tpu_custom_call.1} parent=11 // pred_check_branch
          %97 = sbr.rel (%p95) target = $region16
        $region15: #{tpu_custom_call.1} parent=11 // pred_region
          %s99 = ssub.s32 16, 16
          %100 = vsyncadd [#allocation3], %s99
          %s102 = sshll.u32 [#allocation2], 4
          %s103 = int_to_ptr.vmem [resolvable:$true] %s102
          %105 = dma.hbm_to_vmem [thread:$0]  %s0, 16, %s103, [#allocation3]
        $region16: #{tpu_custom_call.1} parent=11 // pred_fallthru
          _
        // Predicated region
        $region17: #{tpu_custom_call.1} parent=11 // pred_check
          %p106 = pneg %p54
        $region18: #{tpu_custom_call.1} parent=11 // pred_check_branch
          %108 = sbr.rel (%p106) target = $region20
        $region19: #{tpu_custom_call.1} parent=11 // pred_region
          _
        $region20: #{tpu_custom_call.1} parent=11 // pred_fallthru
          _
      $region12: #{tpu_custom_call.1} parent=5 // pred_fallthru
        _
      %p109 = scmp.lt.s32.totalorder %s12, 2
      // Predicated region
      $region21: #{tpu_custom_call.1} parent=5 // pred_check
        %p110 = pneg %p109
      $region22: #{tpu_custom_call.1} parent=5 // pred_check_branch
        %112 = sbr.rel (%p110) target = $region24
      $region23: #{tpu_custom_call.1} parent=5 // pred_region
        _
      $region24: #{tpu_custom_call.1} parent=5 // pred_fallthru
        _
      %p113 = scmp.le.s32.totalorder 1, %s12
      %p114 = scmp.lt.s32.totalorder %s12, 3
      %p115 = pnand %p113, %p114
      %p116 = pneg %p115
      // Predicated region
      $region25: #{tpu_custom_call.1} parent=5 // pred_check
        _
      $region26: #{tpu_custom_call.1} parent=5 // pred_check_branch
        %118 = sbr.rel (%p115) target = $region28
      $region27: #{tpu_custom_call.1} parent=5 // pred_region
        %s119 = ssub.s32 %s12, 1
        // Predicated region
        $region29: #{tpu_custom_call.1} parent=27 // pred_check
          %p120 = pneg %p33
        $region30: #{tpu_custom_call.1} parent=27 // pred_check_branch
          %122 = sbr.rel (%p120) target = $region32
        $region31: #{tpu_custom_call.1} parent=27 // pred_region
          %123 = dma.done [#allocation3], 16
        $region32: #{tpu_custom_call.1} parent=27 // pred_fallthru
          _
        %p124 = pneg %p33
        %p125 = pneg %p30
        %p126 = pneg %p54
        %p127 = pneg %p51
        %p128 = pneg %p80
        %p129 = pneg %p77
        %s130 = sand.u32 %s67, 1
        %s131 = scalar_lea.sflag [#allocation4], %s130
        %s132 = sand.u32 %s67, 1
        %s133 = smul.addr %s132, 8
        %s134 = scalar_lea.vmem [#allocation5], %s133
        %v135 = vld [vmem:[#allocation2] sm:$0x1]
        %s136 = smul.u32 %s17, 8
        %s137 = scvt.s32.f32 %s136
        %v138 = vstv %s137
        %v139 = vmul.f32 %v138, %v135
        %v140 = vld [vmem:[%s1] sm:$0x1]
        %v141 = vadd.f32 %v139, %v140
        %v142 = vlaneseq
        %v143 = vshrl.u32 %v142, 7
        %v144 = vcvt.s32.f32 %v143
        %v146 = vlaneseq
        %v147 = vshrl.u32 %v146, 7
        %v148 = vsub.s32 0, %v147
        %v149 = vrot.slane %v135, %v148
        %v151 = vmul.f32 %v144, %v149
        %v153 = vlaneseq
        %v154 = vshrl.u32 %v153, 7
        %v155 = vsub.s32 0, %v154
        %v156 = vrot.slane %v141, %v155
        %v158 = vadd.f32 %v151, %v156
        %v159 = vand.u32 2147483647, %v158
        %vm160 = vcmp.le.f32.partialorder %v159, 0.7853982
        %vm161 = vcmp.lt.s32.totalorder %v158, 0
        %v162 = vand.u32 %v158, 2139095040
        %v163 = vshrl.u32 %v162, 23
        %v164 = vsub.s32 %v163, 127
        %v165 = vand.u32 2147483647, %v158
        %v166 = vand.u32 %v165, 8388607
        %v167 = vor.u32 %v166, 8388608
        %v168 = vsub.s32 0, %v167
        %v169 = vadd.s32 %v164, 1
        %vm170 = vcmp.gt.s32.totalorder %v169, 0
        %v171 = vsel %vm170, %v169, 0
        %v172 = vshrl.u32 %v171, 5
        %v173 = vand.u32 %v171, 31
        %v174 = vsub.s32 32, %v173
        %v175 = vshrl.u32 683565275, %v174
        %v176 = vshll.u32 683565275, %v173
        %v177 = vshrl.u32 2475754826, %v174
        %v178 = vor.u32 %v176, %v177
        %v179 = vshll.u32 2475754826, %v173
        %v180 = vshrl.u32 2131351028, %v174
        %v181 = vor.u32 %v179, %v180
        %v182 = vshll.u32 2131351028, %v173
        %v183 = vshrl.u32 2102212464, %v174
        %v184 = vor.u32 %v182, %v183
        %v185 = vshll.u32 2102212464, %v173
        %v186 = vshrl.u32 920167782, %v174
        %v187 = vor.u32 %v185, %v186
        %v188 = vshll.u32 920167782, %v173
        %v189 = vshrl.u32 1326507024, %v174
        %v190 = vor.u32 %v188, %v189
        %vm191 = vcmp.lt.s32.totalorder %v172, 1
        %vm192 = vcmp.lt.s32.totalorder %v172, 2
        %vm193 = vcmp.lt.s32.totalorder %v172, 3
        %vm194 = vcmp.lt.s32.totalorder %v172, 4
        %v195 = vsel %vm191, %v175, %v178
        %v196 = vsel %vm194, %v184, 2102212464
        %v197 = vsel %vm193, %v181, %v196
        %v198 = vsel %vm192, %v195, %v197
        %v199 = vsel %vm191, %v178, %v181
        %v200 = vsel %vm194, %v187, 920167782
        %v201 = vsel %vm193, %v184, %v200
        %v202 = vsel %vm192, %v199, %v201
        %v203 = vsel %vm191, %v181, %v184
        %v204 = vsel %vm194, %v190, 1326507024
        %v205 = vsel %vm193, %v187, %v204
        %v206 = vsel %vm192, %v203, %v205
        %v207 = vshll.u32 %v167, 8
        %v208 = vmul.u32.u64.compose %v207, %v206
        %v209 = vextract.low.u32 %v208
        %v210 = vextract.high.u32 %v208
        %v211 = vmul.u32.u64.compose %v207, %v202
        %v212 = vextract.low.u32 %v211
        %v213 = vextract.high.u32 %v211
        %v214 = vmul.u32 %v207, %v198
        %v215 = vadd.s32 %v210, %v212
        %vm216 = vc.u32 %v210, %v212
        %v217 = vadd.s32 %v213, 1
        %v218 = vsel %vm216, %v217, %v213
        %v219 = vadd.s32 %v214, %v218
        %v220 = vadd.s32 %v219, 536870912
        %v221 = vshrl.u32 %v220, 30
        %v222 = vshll.u32 %v221, 30
        %v223 = vsub.s32 %v219, %v222
        %vm224 = vcmp.lt.s32.totalorder %v223, 0
        %v225 = vsub.s32 0, %v223
        %v226 = vsel %vm224, %v225, %v223
        %v227 = vclz %v226
        %v228 = vsub.s32 %v227, 2
        %vm229 = vcmp.gt.s32.totalorder 0, %v228
        %v230 = vsel %vm229, 0, %v228
        %v231 = vsub.s32 32, %v230
        %v232 = vshll.u32 %v223, %v230
        %v233 = vshrl.u32 %v215, %v231
        %v234 = vor.u32 %v232, %v233
        %v235 = vsub.s32 4294967266, %v230
        %v236 = vadd.s32 %v235, 127
        %v237 = vshll.u32 %v236, 23
        %v238 = vor.u32 4788187, %v237
        %v239 = vand.u32 2147483647, %v238
        %v241 = vcvt.s32.f32 %v234
        %v242 = vmul.f32 %v241, %v239
        %v243 = vxor.u32 %v242, 2147483648
        %v244 = vsel %vm161, %v243, %v242
        %v245 = vsub.s32 4, %v221
        %v246 = vsel %vm161, %v245, %v221
        %v247 = vsel %vm160, %v158, %v244
        %v248 = vsel %vm160, 0, %v246
        %v249 = vcosq.f32.pop %v247
        %v250 = vsinq.f32.pop %v247
        %vm251 = vweird.f32 %v158
        %v252 = vadd.s32 %v248, 3
        %v253 = vand.u32 %v252, 3
        %vm254 = vcmp.lt.s32.totalorder %v253, 2
        %vm255 = vcmp.eq.s32.totalorder %v253, 0
        %v256 = vxor.u32 %v250, 2147483648
        %v257 = vsel %vm255, %v249, %v256
        %vm258 = vcmp.eq.s32.totalorder %v253, 2
        %v259 = vxor.u32 %v249, 2147483648
        %v260 = vsel %vm258, %v259, %v250
        %v261 = vsel %vm254, %v257, %v260
        %v262 = vsel %vm251, nan, %v261
        %263 = vst [vmem:[%s134] sm:$0xff] %v262
        %s264 = sand.u32 %s67, 1
        %s265 = scalar_lea.sflag [#allocation4], %s264
        %s266 = sand.u32 %s67, 1
        %s267 = smul.addr %s266, 8
        %s268 = scalar_lea.vmem [#allocation5], %s267
        // Predicated region
        $region33: #{tpu_custom_call.1} parent=27 // pred_check
          %p269 = pneg %p77
        $region34: #{tpu_custom_call.1} parent=27 // pred_check_branch
          %271 = sbr.rel (%p269) target = $region36
        $region35: #{tpu_custom_call.1} parent=27 // pred_region
          %s273 = ssub.s32 128, 128
          %274 = vsyncadd %s265, %s273
          %s275 = smul.addr %s17, 128
          %s276 = scalar_lea.hbm %s2, %s275
          %s278 = sshll.u32 %s268, 4
          %s279 = int_to_ptr.vmem [resolvable:$true] %s278
          %281 = dma.vmem_to_hbm [thread:$0]  %s279, 128, %s276, %s265
        $region36: #{tpu_custom_call.1} parent=27 // pred_fallthru
          _
      $region28: #{tpu_custom_call.1} parent=5 // pred_fallthru
        _
      %p282 = scmp.le.s32.totalorder 2, %s12
      // Predicated region
      $region37: #{tpu_custom_call.1} parent=5 // pred_check
        %p283 = pneg %p282
      $region38: #{tpu_custom_call.1} parent=5 // pred_check_branch
        %285 = sbr.rel (%p283) target = $region40
      $region39: #{tpu_custom_call.1} parent=5 // pred_region
        %s286 = ssub.s32 %s12, 2
        // Predicated region
        $region41: #{tpu_custom_call.1} parent=39 // pred_check
          %p287 = pneg %p83
        $region42: #{tpu_custom_call.1} parent=39 // pred_check_branch
          %289 = sbr.rel (%p287) target = $region44
        $region43: #{tpu_custom_call.1} parent=39 // pred_region
          %s290 = sand.u32 %s68, 1
          %s291 = scalar_lea.sflag [#allocation4], %s290
          %s292 = sand.u32 %s68, 1
          %s293 = smul.addr %s292, 8
          %s294 = scalar_lea.vmem [#allocation5], %s293
          %295 = dma.done %s291, 128
        $region44: #{tpu_custom_call.1} parent=39 // pred_fallthru
          _
      $region40: #{tpu_custom_call.1} parent=5 // pred_fallthru
        _
    $region6: #{tpu_custom_call.1} parent=1 // loop_footer
      %s16 = sadd.s32 1, %s12
    $region7: #{tpu_custom_call.1} parent=1 // loop_footer_branch
      %11 = sbr.rel target = $region3
    $region8: #{tpu_custom_call.1} parent=1 // loop_exit
      _
    %296 = vsyncpa [#allocation3], 1
    %s297 = scalar_lea.sflag [#allocation3], 1
    %298 = vsyncpa %s297, 1
    %299 = vsyncpa [#allocation4], 1
    %s300 = scalar_lea.sflag [#allocation4], 1
    %301 = vsyncpa %s300, 1

</llo_original>
